<compile_context>
chip_gen: v6e
topology: v6e:2x2x1
jax: 0.10.0
libtpu: 0.0.40
codegen_flags: <defaults>
</compile_context>

<pallas_src>
import jax
import jax.numpy as jnp
from jax import lax
from jax.experimental import pallas as pl
from jax.experimental.pallas import tpu as pltpu


def _conv3x3_relu_kernel(x_ref, w_ref, b_ref, o_ref):
    """One grid step: TB images of shape (H, W).

    x_ref: (TB, H, W)  VMEM  input tile
    w_ref: (3, 3)      SMEM  conv weights (scalar reads -> free sreg splats)
    b_ref: (1,)        SMEM  conv bias
    o_ref: (TB, H, W)  VMEM  output tile (accumulated in place, f32 here)
    """
    TB, H, W = x_ref.shape
    x = x_ref[...].astype(jnp.float32)

    # ---- Column (lane-axis) taps, hoisted: built once, reused by all 3 rows.
    #   xl[.., j] = x[.., j-1]  (zero at j == 0)
    #   xr[.., j] = x[.., j+1]  (zero at j == W-1)
    if W > 1:
        zc = jnp.zeros((TB, H, 1), jnp.float32)
        xl = jnp.concatenate([zc, x[:, :, :W - 1]], axis=2)
        xr = jnp.concatenate([x[:, :, 1:], zc], axis=2)
    else:
        xl = jnp.zeros_like(x)
        xr = jnp.zeros_like(x)

    # ---- Per-kernel-row partial sums (pure VPU; weights are SMEM scalars).
    #   p_row_k[r, c] = sum_dj w[k, dj] * x[r, c + dj - 1]
    p_top = w_ref[0, 0] * xl + w_ref[0, 1] * x + w_ref[0, 2] * xr
    p_mid = w_ref[1, 0] * xl + w_ref[1, 1] * x + w_ref[1, 2] * xr
    p_bot = w_ref[2, 0] * xl + w_ref[2, 1] * x + w_ref[2, 2] * xr

    # ---- Row (sublane-axis) combination:
    #   y[i] = p_top[i-1] + p_mid[i] + p_bot[i+1] + bias  (out-of-range rows = 0)
    # done as lane-dense sublane-sliced stores into the output block; ReLU is
    # folded into the last pass so there is no extra full-tile epilogue pass.
    o_ref[...] = (p_mid + b_ref[0]).astype(o_ref.dtype)
    if H > 1:
        o_ref[:, 1:, :] += p_top[:, :H - 1, :].astype(o_ref.dtype)
        o_ref[:, :H - 1, :] = jnp.maximum(
            o_ref[:, :H - 1, :] + p_bot[:, 1:, :].astype(o_ref.dtype), 0.0
        ).astype(o_ref.dtype)
        o_ref[:, H - 1:, :] = jnp.maximum(o_ref[:, H - 1:, :], 0.0)
    else:
        o_ref[...] = jnp.maximum(o_ref[...], 0.0)


def _pick_batch_tile(B, H, W):
    """Batch tile giving <= ~2 MiB of f32 input per grid step (measured knee of
    the HBM-roofline curve), with a mild preference for an even number of grid
    steps so a 2-TensorCore chip (v7x) splits the 'parallel' axis evenly."""
    cap_elems = 512 * 1024                      # 2 MiB of f32 per input block
    tb = max(1, min(B, cap_elems // max(1, H * W)))
    steps = pl.cdiv(B, tb)
    if steps > 1 and steps % 2 == 1:
        for cand in range(tb - 1, max(1, tb // 2) - 1, -1):
            if pl.cdiv(B, cand) % 2 == 0:
                return cand
    return tb


def conv3x3_relu(x, weight, bias):
    """x: (B, 1, H, W) float32 NCHW. Returns (B, 1, H, W) = relu(conv2d(x))."""
    B, C, H, W = x.shape
    assert C == 1, "module is Conv2d(1, 1, 3, padding=1)"
    x3 = x.reshape(B, H, W)                     # free reshape (channel squeeze)
    w = weight.reshape(3, 3).astype(jnp.float32)
    b = bias.reshape(1).astype(jnp.float32)

    TB = _pick_batch_tile(B, H, W)
    grid = (pl.cdiv(B, TB),)

    out = pl.pallas_call(
        _conv3x3_relu_kernel,
        out_shape=jax.ShapeDtypeStruct((B, H, W), x.dtype),
        grid=grid,
        in_specs=[
            pl.BlockSpec((TB, H, W), lambda i: (i, 0, 0)),
            pl.BlockSpec(memory_space=pltpu.MemorySpace.SMEM),   # weights
            pl.BlockSpec(memory_space=pltpu.MemorySpace.SMEM),   # bias
        ],
        out_specs=pl.BlockSpec((TB, H, W), lambda i: (i, 0, 0)),
        compiler_params=pltpu.CompilerParams(
            dimension_semantics=("parallel",),
            vmem_limit_bytes=48 * 1024 * 1024),
    )(x3, w, b)
    return out.reshape(B, 1, H, W)


def _ref_conv_relu(x, w, b):
    """Pure-JAX reference matching nn.Conv2d(1,1,3,padding=1) + ReLU."""
    y = lax.conv_general_dilated(
        x, w, window_strides=(1, 1), padding=((1, 1), (1, 1)),
        dimension_numbers=("NCHW", "OIHW", "NCHW"))
    return jnp.maximum(y + b.reshape(1, -1, 1, 1), 0.0)


if __name__ == "__main__":
    key = jax.random.PRNGKey(0)
    kx, kw, kb = jax.random.split(key, 3)
    B, H, W = 2, 16, 16
    x = jax.random.normal(kx, (B, 1, H, W), dtype=jnp.float32)

    # (1) The module's actual parameters: conv.weight = 1, conv.bias = 0.
    w_ones = jnp.ones((1, 1, 3, 3), dtype=jnp.float32)
    b_zero = jnp.zeros((1,), dtype=jnp.float32)
    y = jax.block_until_ready(conv3x3_relu(x, w_ones, b_zero))
    assert jnp.allclose(y, _ref_conv_relu(x, w_ones, b_zero),
                        atol=1e-5, rtol=1e-5)

    # (2) Random weight/bias vs lax.conv reference — catches flipped-kernel /
    #     transposed-tap bugs that the all-ones weight cannot detect.
    w_rand = jax.random.normal(kw, (1, 1, 3, 3), dtype=jnp.float32)
    b_rand = jax.random.normal(kb, (1,), dtype=jnp.float32)
    y2 = jax.block_until_ready(conv3x3_relu(x, w_rand, b_rand))
    assert jnp.allclose(y2, _ref_conv_relu(x, w_rand, b_rand),
                        atol=1e-4, rtol=1e-4)

    print("KERNEL_OK")
</pallas_src>

<mosaic_0001>
module attributes {stable_mosaic.version = 11 : i64} {
  func.func @_conv3x3_relu_kernel(%arg0: i32, %arg1: memref<2x16x16xf32, #tpu.memory_space<vmem>>, %arg2: memref<3x3xf32, #tpu.memory_space<smem>>, %arg3: memref<1xf32, #tpu.memory_space<smem>>, %arg4: memref<2x16x16xf32, #tpu.memory_space<vmem>>) attributes {dimension_semantics = [#tpu.dimension_semantics<parallel>], iteration_bounds = array<i64: 1>, scalar_prefetch = 0 : i64, scratch_operands = 0 : i64, tpu.core_type = #tpu.core_type<tc>, window_params = [{transform_indices = @transform_0, window_bounds = array<i64: 2, 16, 16>}, {transform_indices = @transform_1, window_bounds = array<i64: 3, 3>}, {transform_indices = @transform_2, window_bounds = array<i64: 1>}, {transform_indices = @transform_3, window_bounds = array<i64: 2, 16, 16>}]} {
    %c0 = arith.constant 0 : index
    %c0_0 = arith.constant 0 : index
    %c0_1 = arith.constant 0 : index
    %0 = vector.load %arg1[%c0, %c0_0, %c0_1] : memref<2x16x16xf32, #tpu.memory_space<vmem>>, vector<2x16x16xf32>
    %cst = arith.constant 0.000000e+00 : f32
    %1 = vector.broadcast %cst : f32 to vector<2x16x1xf32>
    %2 = vector.extract_strided_slice %0 {offsets = [0, 0, 0], sizes = [2, 16, 15], strides = [1, 1, 1]} : vector<2x16x16xf32> to vector<2x16x15xf32>
    %3 = tpu.concatenate %1, %2 in 2 : vector<2x16x1xf32>, vector<2x16x15xf32> -> vector<2x16x16xf32>
    %4 = vector.extract_strided_slice %0 {offsets = [0, 0, 1], sizes = [2, 16, 15], strides = [1, 1, 1]} : vector<2x16x16xf32> to vector<2x16x15xf32>
    %5 = tpu.concatenate %4, %1 in 2 : vector<2x16x15xf32>, vector<2x16x1xf32> -> vector<2x16x16xf32>
    %c0_2 = arith.constant 0 : index
    %c0_3 = arith.constant 0 : index
    %6 = memref.load %arg2[%c0_2, %c0_3] : memref<3x3xf32, #tpu.memory_space<smem>>
    %7 = vector.broadcast %6 : f32 to vector<2x16x16xf32>
    %8 = arith.mulf %7, %3 : vector<2x16x16xf32>
    %c0_4 = arith.constant 0 : index
    %c1 = arith.constant 1 : index
    %9 = memref.load %arg2[%c0_4, %c1] : memref<3x3xf32, #tpu.memory_space<smem>>
    %10 = vector.broadcast %9 : f32 to vector<2x16x16xf32>
    %11 = arith.mulf %10, %0 : vector<2x16x16xf32>
    %12 = arith.addf %8, %11 : vector<2x16x16xf32>
    %c0_5 = arith.constant 0 : index
    %c2 = arith.constant 2 : index
    %13 = memref.load %arg2[%c0_5, %c2] : memref<3x3xf32, #tpu.memory_space<smem>>
    %14 = vector.broadcast %13 : f32 to vector<2x16x16xf32>
    %15 = arith.mulf %14, %5 : vector<2x16x16xf32>
    %16 = arith.addf %12, %15 : vector<2x16x16xf32>
    %c1_6 = arith.constant 1 : index
    %c0_7 = arith.constant 0 : index
    %17 = memref.load %arg2[%c1_6, %c0_7] : memref<3x3xf32, #tpu.memory_space<smem>>
    %18 = vector.broadcast %17 : f32 to vector<2x16x16xf32>
    %19 = arith.mulf %18, %3 : vector<2x16x16xf32>
    %c1_8 = arith.constant 1 : index
    %c1_9 = arith.constant 1 : index
    %20 = memref.load %arg2[%c1_8, %c1_9] : memref<3x3xf32, #tpu.memory_space<smem>>
    %21 = vector.broadcast %20 : f32 to vector<2x16x16xf32>
    %22 = arith.mulf %21, %0 : vector<2x16x16xf32>
    %23 = arith.addf %19, %22 : vector<2x16x16xf32>
    %c1_10 = arith.constant 1 : index
    %c2_11 = arith.constant 2 : index
    %24 = memref.load %arg2[%c1_10, %c2_11] : memref<3x3xf32, #tpu.memory_space<smem>>
    %25 = vector.broadcast %24 : f32 to vector<2x16x16xf32>
    %26 = arith.mulf %25, %5 : vector<2x16x16xf32>
    %27 = arith.addf %23, %26 : vector<2x16x16xf32>
    %c2_12 = arith.constant 2 : index
    %c0_13 = arith.constant 0 : index
    %28 = memref.load %arg2[%c2_12, %c0_13] : memref<3x3xf32, #tpu.memory_space<smem>>
    %29 = vector.broadcast %28 : f32 to vector<2x16x16xf32>
    %30 = arith.mulf %29, %3 : vector<2x16x16xf32>
    %c2_14 = arith.constant 2 : index
    %c1_15 = arith.constant 1 : index
    %31 = memref.load %arg2[%c2_14, %c1_15] : memref<3x3xf32, #tpu.memory_space<smem>>
    %32 = vector.broadcast %31 : f32 to vector<2x16x16xf32>
    %33 = arith.mulf %32, %0 : vector<2x16x16xf32>
    %34 = arith.addf %30, %33 : vector<2x16x16xf32>
    %c2_16 = arith.constant 2 : index
    %c2_17 = arith.constant 2 : index
    %35 = memref.load %arg2[%c2_16, %c2_17] : memref<3x3xf32, #tpu.memory_space<smem>>
    %36 = vector.broadcast %35 : f32 to vector<2x16x16xf32>
    %37 = arith.mulf %36, %5 : vector<2x16x16xf32>
    %38 = arith.addf %34, %37 : vector<2x16x16xf32>
    %c0_18 = arith.constant 0 : index
    %39 = memref.load %arg3[%c0_18] : memref<1xf32, #tpu.memory_space<smem>>
    %40 = vector.broadcast %39 : f32 to vector<2x16x16xf32>
    %41 = arith.addf %27, %40 : vector<2x16x16xf32>
    %c0_19 = arith.constant 0 : index
    %c0_20 = arith.constant 0 : index
    %c0_21 = arith.constant 0 : index
    %42 = vector.load %arg4[%c0_19, %c0_20, %c0_21] : memref<2x16x16xf32, #tpu.memory_space<vmem>>, vector<2x16x16xf32>
    tpu.vector_store %arg4[%c0_19, %c0_20, %c0_21], %41 {strides = array<i32>} : memref<2x16x16xf32, #tpu.memory_space<vmem>>, vector<2x16x16xf32>,
    %c0_22 = arith.constant 0 : index
    %c1_23 = arith.constant 1 : index
    %c0_24 = arith.constant 0 : index
    %43 = vector.load %arg4[%c0_22, %c1_23, %c0_24] : memref<2x16x16xf32, #tpu.memory_space<vmem>>, vector<2x15x16xf32>
    %44 = vector.extract_strided_slice %16 {offsets = [0, 0, 0], sizes = [2, 15, 16], strides = [1, 1, 1]} : vector<2x16x16xf32> to vector<2x15x16xf32>
    %45 = arith.addf %43, %44 : vector<2x15x16xf32>
    %c0_25 = arith.constant 0 : index
    %c1_26 = arith.constant 1 : index
    %c0_27 = arith.constant 0 : index
    %46 = vector.load %arg4[%c0_25, %c1_26, %c0_27] : memref<2x16x16xf32, #tpu.memory_space<vmem>>, vector<2x15x16xf32>
    tpu.vector_store %arg4[%c0_25, %c1_26, %c0_27], %45 {strides = array<i32>} : memref<2x16x16xf32, #tpu.memory_space<vmem>>, vector<2x15x16xf32>,
    %c0_28 = arith.constant 0 : index
    %c0_29 = arith.constant 0 : index
    %c0_30 = arith.constant 0 : index
    %47 = vector.load %arg4[%c0_28, %c0_29, %c0_30] : memref<2x16x16xf32, #tpu.memory_space<vmem>>, vector<2x15x16xf32>
    %48 = vector.extract_strided_slice %38 {offsets = [0, 1, 0], sizes = [2, 15, 16], strides = [1, 1, 1]} : vector<2x16x16xf32> to vector<2x15x16xf32>
    %49 = arith.addf %47, %48 : vector<2x15x16xf32>
    %cst_31 = arith.constant 0.000000e+00 : f32
    %50 = vector.broadcast %cst_31 : f32 to vector<2x15x16xf32>
    %51 = arith.maximumf %49, %50 : vector<2x15x16xf32>
    %c0_32 = arith.constant 0 : index
    %c0_33 = arith.constant 0 : index
    %c0_34 = arith.constant 0 : index
    %52 = vector.load %arg4[%c0_32, %c0_33, %c0_34] : memref<2x16x16xf32, #tpu.memory_space<vmem>>, vector<2x15x16xf32>
    tpu.vector_store %arg4[%c0_32, %c0_33, %c0_34], %51 {strides = array<i32>} : memref<2x16x16xf32, #tpu.memory_space<vmem>>, vector<2x15x16xf32>,
    %c0_35 = arith.constant 0 : index
    %c15 = arith.constant 15 : index
    %c0_36 = arith.constant 0 : index
    %53 = vector.load %arg4[%c0_35, %c15, %c0_36] : memref<2x16x16xf32, #tpu.memory_space<vmem>>, vector<2x1x16xf32>
    %cst_37 = arith.constant 0.000000e+00 : f32
    %54 = vector.broadcast %cst_37 : f32 to vector<2x1x16xf32>
    %55 = arith.maximumf %53, %54 : vector<2x1x16xf32>
    %c0_38 = arith.constant 0 : index
    %c15_39 = arith.constant 15 : index
    %c0_40 = arith.constant 0 : index
    %56 = vector.load %arg4[%c0_38, %c15_39, %c0_40] : memref<2x16x16xf32, #tpu.memory_space<vmem>>, vector<2x1x16xf32>
    tpu.vector_store %arg4[%c0_38, %c15_39, %c0_40], %55 {strides = array<i32>} : memref<2x16x16xf32, #tpu.memory_space<vmem>>, vector<2x1x16xf32>,
    return
  }
  func.func @transform_0(%arg0: i32) -> (i32, i32, i32) {
    %c0_i32 = arith.constant 0 : i32
    %c0_i32_0 = arith.constant 0 : i32
    %c0_i32_1 = arith.constant 0 : i32
    return %arg0, %c0_i32, %c0_i32_0 : i32, i32, i32
  }
  func.func @transform_1(%arg0: i32) -> (i32, i32) {
    %c0_i32 = arith.constant 0 : i32
    %c0_i32_0 = arith.constant 0 : i32
    %c0_i32_1 = arith.constant 0 : i32
    return %c0_i32, %c0_i32_0 : i32, i32
  }
  func.func @transform_2(%arg0: i32) -> i32 {
    %c0_i32 = arith.constant 0 : i32
    %c0_i32_0 = arith.constant 0 : i32
    return %c0_i32 : i32
  }
  func.func @transform_3(%arg0: i32) -> (i32, i32, i32) {
    %c0_i32 = arith.constant 0 : i32
    %c0_i32_0 = arith.constant 0 : i32
    %c0_i32_1 = arith.constant 0 : i32
    return %arg0, %c0_i32, %c0_i32_0 : i32, i32, i32
  }
}

</mosaic_0001>

<llo_original>
// kernel: tpu_custom_call.1
$region0: #{tpu_custom_call.1}
  #allocation0 [shape = 'u32[]', space=smem, size = 0x4, offset = 0x4, fixed_abs, tag = 'smem constant byte address 0x4 - core index']
  #allocation1 [shape = 'u32[144,128]{1,0:T(1,128)}', space=vmem, size = 0x12000, scoped, tag = 'internal scratch']
  #allocation2 [shape = 'f32[1]{0:T(128)S(6)}', space=smem, size = 0x200, scoped, tag = 'scoped memory for tpu_custom_call.1']
  %s0 = inlined_call_operand.hbm [shape: f32[2,16,16], index: 0, kind: input, shape index: {}]
  %s1 = inlined_call_operand.hbm [shape: f32[3,3], index: 1, kind: input, shape index: {}]
  %s2 = inlined_call_operand.<no memory space> [shape: f32[1], index: 2, kind: input, shape index: {}]
  %s3 = inlined_call_operand.hbm [shape: f32[2,16,16], index: 3, kind: output, shape index: {}]
  %s4 = sld [smem:[#allocation0]]
  $region30: #{tpu_custom_call.1} parent=0
    _
  %s6 = ssub.s32 1, %s4
  %s7 = scalar_select 0, %s6, %s4
  %8 = sst [smem:[#allocation2]] %s2
  $region1: #{tpu_custom_call.1} parent=0
    #allocation3 [shape = 'u8[16384]{0}', space=vmem, size = 0x4000, scoped, tag = 'input window, operand 0, single buffered']
    #allocation4 [shape = 's32[1]{0}', space=sflag, size = 0x4, scoped, tag = 'scoped memory for tpu_custom_call.1']
    #allocation5 [shape = 's32[1]{0}', space=sflag, size = 0x4, scoped, tag = 'scoped memory for tpu_custom_call.1']
    #allocation6 [shape = 's32[1]{0}', space=sflag, size = 0x4, scoped, tag = 'scoped memory for tpu_custom_call.1']
    #allocation7 [shape = 'u8[2048]{0}', space=smem, size = 0x800, scoped, tag = 'input window, operand 1, single buffered']
    #allocation8 [shape = 'u8[16384]{0}', space=vmem, size = 0x4000, scoped, tag = 'output window, operand 0, single buffered']
    %9 = vsyncpa [#allocation4], 0
    %10 = vsyncpa [#allocation6], 0
    %11 = vsyncpa [#allocation5], 0
    // Predicated region
    $region2: #{tpu_custom_call.1} parent=1 // pred_check
      _
    $region3: #{tpu_custom_call.1} parent=1 // pred_check_branch
      %13 = sbr.rel (0) target = $region5
    $region4: #{tpu_custom_call.1} parent=1 // pred_region
      %s15 = ssub.s32 512, 512
      %16 = vsyncadd [#allocation4], %s15
      %s17 = sshll.u32 [#allocation3], 4
      %s18 = int_to_ptr.vmem [resolvable:$true] %s17
      %23 = dma.hbm_to_vmem [thread:$0]  %s0, 512, %s18, [#allocation4], 128, 128, 8
    $region5: #{tpu_custom_call.1} parent=1 // pred_fallthru
      _
    // Predicated region
    $region6: #{tpu_custom_call.1} parent=1 // pred_check
      _
    $region7: #{tpu_custom_call.1} parent=1 // pred_check_branch
      %25 = sbr.rel (0) target = $region9
    $region8: #{tpu_custom_call.1} parent=1 // pred_region
      %s27 = ssub.s32 64, 64
      %28 = vsyncadd [#allocation6], %s27
      %31 = dma.hbm_to_smem %s1, 64, [#allocation7], [#allocation6]
    $region9: #{tpu_custom_call.1} parent=1 // pred_fallthru
      _
    // Predicated region
    $region10: #{tpu_custom_call.1} parent=1 // pred_check
      _
    $region11: #{tpu_custom_call.1} parent=1 // pred_check_branch
      %33 = sbr.rel (0) target = $region13
    $region12: #{tpu_custom_call.1} parent=1 // pred_region
      _
    $region13: #{tpu_custom_call.1} parent=1 // pred_fallthru
      _
    // Predicated region
    $region14: #{tpu_custom_call.1} parent=1 // pred_check
      _
    $region15: #{tpu_custom_call.1} parent=1 // pred_check_branch
      %35 = sbr.rel (0) target = $region17
    $region16: #{tpu_custom_call.1} parent=1 // pred_region
      %36 = dma.done [#allocation4], 512
    $region17: #{tpu_custom_call.1} parent=1 // pred_fallthru
      _
    // Predicated region
    $region18: #{tpu_custom_call.1} parent=1 // pred_check
      _
    $region19: #{tpu_custom_call.1} parent=1 // pred_check_branch
      %38 = sbr.rel (0) target = $region21
    $region20: #{tpu_custom_call.1} parent=1 // pred_region
      %39 = dma.done [#allocation6], 64
    $region21: #{tpu_custom_call.1} parent=1 // pred_fallthru
      _
    %40 = sfence
    %v41 = vld [vmem:[#allocation3] sm:$0xff]
    %v42 = vld [vmem:[#allocation3 + $0x8] sm:$0xff]
    %v43 = vld [vmem:[#allocation3 + $0x10] sm:$0xff]
    %v44 = vld [vmem:[#allocation3 + $0x18] sm:$0xff]
    %49 = vrot.lane.b32.xlu0 %v41, 1
    %v50 = vpop.permute.xlu0 %49
    %51 = vrot.lane.b32.xlu0 %v42, 1
    %v52 = vpop.permute.xlu0 %51
    %53 = vrot.lane.b32.xlu0 %v43, 1
    %v54 = vpop.permute.xlu0 %53
    %55 = vrot.lane.b32.xlu0 %v44, 1
    %v56 = vpop.permute.xlu0 %55
    %vm61 = vcmask 7168
    %v62 = vsel %vm61, 0.0, %v50
    %v63 = vsel %vm61, 0.0, %v52
    %v64 = vsel %vm61, 0.0, %v54
    %v65 = vsel %vm61, 0.0, %v56
    %66 = vrot.lane.b32.xlu0 %v41, 127
    %v67 = vpop.permute.xlu0 %66
    %68 = vrot.lane.b32.xlu0 %v42, 127
    %v69 = vpop.permute.xlu0 %68
    %70 = vrot.lane.b32.xlu0 %v43, 127
    %v71 = vpop.permute.xlu0 %70
    %72 = vrot.lane.b32.xlu0 %v44, 127
    %v73 = vpop.permute.xlu0 %72
    %vm78 = vcmask 121856
    %v79 = vsel %vm78, %v67, 0.0
    %v80 = vsel %vm78, %v69, 0.0
    %v81 = vsel %vm78, %v71, 0.0
    %v82 = vsel %vm78, %v73, 0.0
    %s83 = sld [smem:[#allocation7]]
    %v84 = vstv %s83
    %v85 = vmul.f32 %v84, %v62
    %v86 = vmul.f32 %v84, %v63
    %v87 = vmul.f32 %v84, %v64
    %v88 = vmul.f32 %v84, %v65
    %s89 = sld [smem:[#allocation7 + $0x1]]
    %v90 = vstv %s89
    %v91 = vmul.f32 %v90, %v41
    %v92 = vmul.f32 %v90, %v42
    %v93 = vmul.f32 %v90, %v43
    %v94 = vmul.f32 %v90, %v44
    %v95 = vadd.f32 %v85, %v91
    %v96 = vadd.f32 %v86, %v92
    %v97 = vadd.f32 %v87, %v93
    %v98 = vadd.f32 %v88, %v94
    %s99 = sld [smem:[#allocation7 + $0x2]]
    %v100 = vstv %s99
    %v101 = vmul.f32 %v100, %v79
    %v102 = vmul.f32 %v100, %v80
    %v103 = vmul.f32 %v100, %v81
    %v104 = vmul.f32 %v100, %v82
    %v105 = vadd.f32 %v95, %v101
    %v106 = vadd.f32 %v96, %v102
    %v107 = vadd.f32 %v97, %v103
    %v108 = vadd.f32 %v98, %v104
    %s109 = sld [smem:[#allocation7 + $0x80]]
    %v110 = vstv %s109
    %v111 = vmul.f32 %v110, %v62
    %v112 = vmul.f32 %v110, %v63
    %v113 = vmul.f32 %v110, %v64
    %v114 = vmul.f32 %v110, %v65
    %s115 = sld [smem:[#allocation7 + $0x81]]
    %v116 = vstv %s115
    %v117 = vmul.f32 %v116, %v41
    %v118 = vmul.f32 %v116, %v42
    %v119 = vmul.f32 %v116, %v43
    %v120 = vmul.f32 %v116, %v44
    %v121 = vadd.f32 %v111, %v117
    %v122 = vadd.f32 %v112, %v118
    %v123 = vadd.f32 %v113, %v119
    %v124 = vadd.f32 %v114, %v120
    %s125 = sld [smem:[#allocation7 + $0x82]]
    %v126 = vstv %s125
    %v127 = vmul.f32 %v126, %v79
    %v128 = vmul.f32 %v126, %v80
    %v129 = vmul.f32 %v126, %v81
    %v130 = vmul.f32 %v126, %v82
    %v131 = vadd.f32 %v121, %v127
    %v132 = vadd.f32 %v122, %v128
    %v133 = vadd.f32 %v123, %v129
    %v134 = vadd.f32 %v124, %v130
    %s135 = sld [smem:[#allocation7 + $0x100]]
    %v136 = vstv %s135
    %v137 = vmul.f32 %v136, %v62
    %v138 = vmul.f32 %v136, %v63
    %v139 = vmul.f32 %v136, %v64
    %v140 = vmul.f32 %v136, %v65
    %s141 = sld [smem:[#allocation7 + $0x101]]
    %v142 = vstv %s141
    %v143 = vmul.f32 %v142, %v41
    %v144 = vmul.f32 %v142, %v42
    %v145 = vmul.f32 %v142, %v43
    %v146 = vmul.f32 %v142, %v44
    %v147 = vadd.f32 %v137, %v143
    %v148 = vadd.f32 %v138, %v144
    %v149 = vadd.f32 %v139, %v145
    %v150 = vadd.f32 %v140, %v146
    %s151 = sld [smem:[#allocation7 + $0x102]]
    %v152 = vstv %s151
    %v153 = vmul.f32 %v152, %v79
    %v154 = vmul.f32 %v152, %v80
    %v155 = vmul.f32 %v152, %v81
    %v156 = vmul.f32 %v152, %v82
    %v157 = vadd.f32 %v147, %v153
    %v158 = vadd.f32 %v148, %v154
    %v159 = vadd.f32 %v149, %v155
    %v160 = vadd.f32 %v150, %v156
    %s161 = sld [smem:[#allocation2]]
    %v162 = vstv %s161
    %v163 = vadd.f32 %v131, %v162
    %v164 = vadd.f32 %v132, %v162
    %v165 = vadd.f32 %v133, %v162
    %v166 = vadd.f32 %v134, %v162
    %vm167 = vcmask 130048
    %168 = vst.msk [vmem:[#allocation8] sm:$0xff] %vm167, %v163
    %169 = vst.msk [vmem:[#allocation8 + $0x8] sm:$0xff] %vm167, %v164
    %170 = vst.msk [vmem:[#allocation8 + $0x10] sm:$0xff] %vm167, %v165
    %171 = vst.msk [vmem:[#allocation8 + $0x18] sm:$0xff] %vm167, %v166
    %v172 = vld [vmem:[#allocation8 + $0x1] sm:$0xff]
    %v173 = vld [vmem:[#allocation8 + $0x9] sm:$0x7f]
    %v174 = vld [vmem:[#allocation8 + $0x11] sm:$0xff]
    %v175 = vld [vmem:[#allocation8 + $0x19] sm:$0x7f]
    %v176 = vadd.f32 %v172, %v105
    %v177 = vadd.f32 %v173, %v106
    %v178 = vadd.f32 %v174, %v107
    %v179 = vadd.f32 %v175, %v108
    %180 = vst.msk [vmem:[#allocation8 + $0x1] sm:$0xff] %vm167, %v176
    %vm181 = vcmask 129024
    %182 = vst.msk [vmem:[#allocation8 + $0x9] sm:$0x7f] %vm181, %v177
    %183 = vst.msk [vmem:[#allocation8 + $0x11] sm:$0xff] %vm167, %v178
    %184 = vst.msk [vmem:[#allocation8 + $0x19] sm:$0x7f] %vm181, %v179
    %v185 = vld [vmem:[#allocation8] sm:$0xff]
    %v186 = vld [vmem:[#allocation8 + $0x8] sm:$0x7f]
    %v187 = vld [vmem:[#allocation8 + $0x10] sm:$0xff]
    %v188 = vld [vmem:[#allocation8 + $0x18] sm:$0x7f]
    %vm193 = vcmask 1046528
    %v194 = vrot.slane %v157, 1
    %v195 = vrot.slane %v158, 1
    %v196 = vsel %vm193, %v194, %v195
    %v197 = vrot.slane %v159, 1
    %v198 = vrot.slane %v160, 1
    %v199 = vsel %vm193, %v197, %v198
    %v204 = vadd.f32 %v185, %v196
    %v205 = vadd.f32 %v186, %v195
    %v206 = vadd.f32 %v187, %v199
    %v207 = vadd.f32 %v188, %v198
    %v208 = vmax.f32 %v204, 0.0
    %v209 = vmax.f32 %v205, 0.0
    %v210 = vmax.f32 %v206, 0.0
    %v211 = vmax.f32 %v207, 0.0
    %212 = vst.msk [vmem:[#allocation8] sm:$0xff] %vm167, %v208
    %213 = vst.msk [vmem:[#allocation8 + $0x8] sm:$0x7f] %vm181, %v209
    %214 = vst.msk [vmem:[#allocation8 + $0x10] sm:$0xff] %vm167, %v210
    %215 = vst.msk [vmem:[#allocation8 + $0x18] sm:$0x7f] %vm181, %v211
    %v216 = vld [vmem:[#allocation8 + $0xf] sm:$0x1]
    %v217 = vld [vmem:[#allocation8 + $0x1f] sm:$0x1]
    %v218 = vmax.f32 %v216, 0.0
    %v219 = vmax.f32 %v217, 0.0
    %vm220 = vcmask 122880
    %221 = vst.msk [vmem:[#allocation8 + $0xf] sm:$0x1] %vm220, %v218
    %222 = vst.msk [vmem:[#allocation8 + $0x1f] sm:$0x1] %vm220, %v219
    // Predicated region
    $region22: #{tpu_custom_call.1} parent=1 // pred_check
      _
    $region23: #{tpu_custom_call.1} parent=1 // pred_check_branch
      %224 = sbr.rel (0) target = $region25
    $region24: #{tpu_custom_call.1} parent=1 // pred_region
      %s226 = ssub.s32 512, 512
      %227 = vsyncadd [#allocation5], %s226
      %s228 = sshll.u32 [#allocation8], 4
      %s229 = int_to_ptr.vmem [resolvable:$true] %s228
      %234 = dma.vmem_to_hbm [thread:$0]  %s229, 512, %s3, [#allocation5], 128, 128, 8
    $region25: #{tpu_custom_call.1} parent=1 // pred_fallthru
      _
    // Predicated region
    $region26: #{tpu_custom_call.1} parent=1 // pred_check
      _
    $region27: #{tpu_custom_call.1} parent=1 // pred_check_branch
      %236 = sbr.rel (0) target = $region29
    $region28: #{tpu_custom_call.1} parent=1 // pred_region
      %237 = dma.done [#allocation5], 512
    $region29: #{tpu_custom_call.1} parent=1 // pred_fallthru
      _
    %238 = vsyncpa [#allocation4], 1
    %239 = vsyncpa [#allocation5], 1
    %240 = vsyncpa [#allocation6], 1

</llo_original>
